<compile_context>
chip_gen: v7x
topology: tpu7x:2x2x1
jax: 0.10.0
libtpu: 0.0.40
codegen_flags: <defaults>
</compile_context>

<pallas_src>
import functools
import math

import jax
import jax.numpy as jnp
import numpy as np
from jax.experimental import pallas as pl
from jax.experimental.pallas import tpu as pltpu


def _loss_kernel(consts_ref, preds_ref, texp_ref, out_ref, *,
                 block_rows, valid_rows, lanes, num_q, num_features,
                 mask_rows):
    """One row-block: fused pinball + smoothness + crossing partial sum."""
    i = pl.program_id(0)

    p = preds_ref[...].astype(jnp.float32)          # (block_rows, lanes)
    t = texp_ref[...].astype(jnp.float32)           # (block_rows, lanes)
    c = consts_ref[...]                             # (4, lanes) f32

    w_hi = c[0:1, :]   # quantile / (Q*B*F)
    w_lo = c[1:2, :]   # (quantile - 1) / (Q*B*F)
    w_sm = c[2:3, :]   # lambda / (Q*B*(F-1)) where f < F-1, else 0
    w_cr = c[3:4, :]   # 1 / (B*F) where q < Q-1, else 0

    if mask_rows:
        # Only compiled in when the last grid block is partial.  Select
        # (not multiply) so garbage/NaN in the out-of-bounds rows never
        # enters the arithmetic; zeroed rows contribute exactly 0.
        row_ids = i * block_rows + jax.lax.broadcasted_iota(
            jnp.int32, (block_rows, 1), 0)
        in_bounds = row_ids < valid_rows
        p = jnp.where(in_bounds, p, 0.0)
        t = jnp.where(in_bounds, t, 0.0)

    # Pinball loss, all quantiles at once (weights are per-lane constants).
    err = t - p
    elem = jnp.maximum(w_lo * err, w_hi * err)

    # Smoothness: |p[b, f+1, q] - p[b, f, q]|  == lane shift by Q, masked.
    if num_features > 1:
        p_next_f = pltpu.roll(p, shift=lanes - num_q, axis=1)
        elem = elem + jnp.abs(p_next_f - p) * w_sm

    # Crossing: relu(p[b, f, q] - p[b, f, q+1]) == lane shift by 1, masked.
    if num_q > 1:
        p_next_q = pltpu.roll(p, shift=lanes - 1, axis=1)
        elem = elem + jnp.maximum(p - p_next_q, 0.0) * w_cr

    # Single deferred reduction; global denominators are already folded into
    # the weights, so per-block partial sums add up to the final loss.
    contrib = jnp.sum(elem)
    out_ref[...] = contrib * jnp.ones((1, 8, 128), jnp.float32)


def _lane_constants(quantiles, num_features, batch, lanes, smoothness_lambda):
    """Per-lane weight/mask vectors with the global denominators folded in."""
    q = np.asarray(quantiles, dtype=np.float64)
    nq = q.shape[0]
    nf = num_features
    j = np.arange(lanes)
    q_idx = j % nq
    f_idx = (j // nq) % nf

    pin_scale = 1.0 / (nq * batch * nf)
    w_hi = q[q_idx] * pin_scale
    w_lo = (q[q_idx] - 1.0) * pin_scale
    if nf > 1:
        w_sm = (f_idx != nf - 1) * (smoothness_lambda / (nq * batch * (nf - 1)))
    else:
        w_sm = np.zeros(lanes)
    if nq > 1:
        w_cr = (q_idx != nq - 1) * (1.0 / (batch * nf))
    else:
        w_cr = np.zeros(lanes)
    return np.stack([w_hi, w_lo, w_sm, w_cr]).astype(np.float32)


def enhanced_quantile_loss(preds, target, quantiles, smoothness_lambda=0.1,
                           block_rows=None):
    """preds: anything reshapeable to (-1, F, Q); target: (B, F) -> scalar."""
    batch, num_features = target.shape
    num_q = len(quantiles)
    n_elems = batch * num_features * num_q

    preds_flat = jnp.reshape(preds, (-1,))
    if preds_flat.shape[0] != n_elems:
        raise ValueError("preds size does not match target / quantiles")

    # Lane-dense layout: lanes = G * F * Q is a multiple of 128 (no (8,128)
    # padding) and of F*Q (no (b, f, q) group straddles a row, so the lane
    # rolls above stay within a batch element).
    group = num_features * num_q
    lanes = group * (128 // math.gcd(group, 128))
    rows = pl.cdiv(n_elems, lanes)

    # Target expanded to preds' flat (b, f, q) order (sequential-access
    # repeat of the *small* tensor; preds itself is only reshaped).
    texp_flat = jnp.reshape(jnp.repeat(target, num_q, axis=-1), (-1,))

    pad = rows * lanes - n_elems
    if pad:
        # Zero padding is exact: padded elements contribute 0 to every term
        # (padding is always whole (f, q) groups because lanes % group == 0).
        preds_flat = jnp.pad(preds_flat, (0, pad))
        texp_flat = jnp.pad(texp_flat, (0, pad))

    preds2d = jnp.reshape(preds_flat, (rows, lanes))
    texp2d = jnp.reshape(texp_flat, (rows, lanes))

    # ~2 MiB row-blocks: large enough to sit near the HBM roofline, small
    # enough (x2 inputs x2 pipeline buffers <= ~16 MiB even for huge F*Q) for
    # the 32 MiB scoped-VMEM limit on v5e/v6e/v7x.
    if block_rows is None:
        block_rows = max(8, ((2 << 20) // (lanes * 4)) // 8 * 8)
    if rows <= block_rows:
        block_rows = rows                      # full extent -> always legal
    else:
        block_rows = max(8, (block_rows // 8) * 8)
    num_blocks = pl.cdiv(rows, block_rows)
    mask_rows = (rows % block_rows) != 0       # compile-time: skip mask ops
                                               # when the grid divides evenly

    consts = jnp.asarray(
        _lane_constants(quantiles, num_features, batch, lanes,
                        smoothness_lambda))

    kernel = functools.partial(
        _loss_kernel,
        block_rows=block_rows,
        valid_rows=rows,
        lanes=lanes,
        num_q=num_q,
        num_features=num_features,
        mask_rows=mask_rows,
    )

    partials = pl.pallas_call(
        kernel,
        out_shape=jax.ShapeDtypeStruct((num_blocks, 8, 128), jnp.float32),
        grid=(num_blocks,),
        in_specs=[
            pl.BlockSpec((4, lanes), lambda i: (0, 0)),            # constants
            pl.BlockSpec((block_rows, lanes), lambda i: (i, 0)),   # preds
            pl.BlockSpec((block_rows, lanes), lambda i: (i, 0)),   # target exp
        ],
        out_specs=pl.BlockSpec((1, 8, 128), lambda i: (i, 0, 0)),
        compiler_params=pltpu.CompilerParams(
            dimension_semantics=("parallel",),   # shards across v7x's 2 TCs
            vmem_limit_bytes=32 * 1024 * 1024,
        ),
    )(consts, preds2d, texp2d)

    # Per-block partial contributions (already globally scaled) -> scalar.
    return jnp.sum(partials[:, 0, 0])


def _reference(preds, target, quantiles, smoothness_lambda=0.1):
    """Pure-JAX reference mirroring the PyTorch forward, for verification."""
    num_features = target.shape[1]
    num_q = len(quantiles)
    preds = preds.reshape(-1, num_features, num_q)
    losses = []
    for i, q in enumerate(quantiles):
        pred_q = preds[:, :, i]
        errors = target - pred_q
        loss_q = jnp.mean(jnp.maximum((q - 1.0) * errors, q * errors))
        if num_features > 1:
            loss_q = loss_q + smoothness_lambda * jnp.mean(
                jnp.abs(pred_q[:, 1:] - pred_q[:, :-1]))
        losses.append(loss_q)
    crossing = 0.0
    for i in range(num_q - 1):
        crossing = crossing + jnp.mean(
            jax.nn.relu(preds[:, :, i] - preds[:, :, i + 1]))
    return jnp.stack(losses).mean() + crossing


if __name__ == "__main__":
    quantiles = (0.1, 0.5, 0.9)
    smoothness_lambda = 0.1
    Q = len(quantiles)

    key = jax.random.PRNGKey(0)
    k1, k2, k3, k4, k5, k6 = jax.random.split(key, 6)

    # Small canonical shape: batch=8, features=4, quantiles=3 (single block).
    B, F = 8, 4
    preds = jax.random.normal(k1, (B, F * Q), dtype=jnp.float32)
    target = jax.random.normal(k2, (B, F), dtype=jnp.float32)
    loss = enhanced_quantile_loss(preds, target, quantiles, smoothness_lambda)
    loss = jax.block_until_ready(loss)
    ref = _reference(preds, target, quantiles, smoothness_lambda)
    assert jnp.allclose(loss, ref, atol=1e-5, rtol=1e-5), (loss, ref)

    # Larger shape exercising multi-block pipelining, lane padding and the
    # partial-last-block row mask (block_rows forced small for the test).
    B2 = 700
    preds2 = jax.random.normal(k3, (B2, F * Q), dtype=jnp.float32)
    target2 = jax.random.normal(k4, (B2, F), dtype=jnp.float32)
    loss2 = enhanced_quantile_loss(preds2, target2, quantiles,
                                   smoothness_lambda, block_rows=8)
    loss2 = jax.block_until_ready(loss2)
    ref2 = _reference(preds2, target2, quantiles, smoothness_lambda)
    assert jnp.allclose(loss2, ref2, atol=1e-4, rtol=1e-4), (loss2, ref2)

    # Single-feature case: smoothness branch compiled out entirely.
    B3, F3 = 16, 1
    preds3 = jax.random.normal(k5, (B3, F3 * Q), dtype=jnp.float32)
    target3 = jax.random.normal(k6, (B3, F3), dtype=jnp.float32)
    loss3 = enhanced_quantile_loss(preds3, target3, quantiles,
                                   smoothness_lambda)
    loss3 = jax.block_until_ready(loss3)
    ref3 = _reference(preds3, target3, quantiles, smoothness_lambda)
    assert jnp.allclose(loss3, ref3, atol=1e-5, rtol=1e-5), (loss3, ref3)

    print("KERNEL_OK")
</pallas_src>

<mosaic_0001>
module attributes {stable_mosaic.version = 11 : i64} {
  func.func @_loss_kernel(%arg0: i32, %arg1: memref<4x384xf32, #tpu.memory_space<vmem>>, %arg2: memref<1x384xf32, #tpu.memory_space<vmem>>, %arg3: memref<1x384xf32, #tpu.memory_space<vmem>>, %arg4: memref<1x8x128xf32, #tpu.memory_space<vmem>>) attributes {dimension_semantics = [#tpu.dimension_semantics<parallel>], iteration_bounds = array<i64: 1>, scalar_prefetch = 0 : i64, scratch_operands = 0 : i64, tpu.core_type = #tpu.core_type<tc>, window_params = [{pipeline_mode = #tpu.pipeline_mode<synchronous>, transform_indices = @transform_0, window_bounds = array<i64: 4, 384>}, {transform_indices = @transform_1, window_bounds = array<i64: 1, 384>}, {transform_indices = @transform_2, window_bounds = array<i64: 1, 384>}, {transform_indices = @transform_3, window_bounds = array<i64: 1, 8, 128>}]} {
    %c0 = arith.constant 0 : index
    %c0_0 = arith.constant 0 : index
    %0 = vector.load %arg2[%c0, %c0_0] : memref<1x384xf32, #tpu.memory_space<vmem>>, vector<1x384xf32>
    %c0_1 = arith.constant 0 : index
    %c0_2 = arith.constant 0 : index
    %1 = vector.load %arg3[%c0_1, %c0_2] : memref<1x384xf32, #tpu.memory_space<vmem>>, vector<1x384xf32>
    %c0_3 = arith.constant 0 : index
    %c0_4 = arith.constant 0 : index
    %2 = vector.load %arg1[%c0_3, %c0_4] : memref<4x384xf32, #tpu.memory_space<vmem>>, vector<4x384xf32>
    %3 = vector.extract_strided_slice %2 {offsets = [0, 0], sizes = [1, 384], strides = [1, 1]} : vector<4x384xf32> to vector<1x384xf32>
    %4 = vector.extract_strided_slice %2 {offsets = [1, 0], sizes = [1, 384], strides = [1, 1]} : vector<4x384xf32> to vector<1x384xf32>
    %5 = vector.extract_strided_slice %2 {offsets = [2, 0], sizes = [1, 384], strides = [1, 1]} : vector<4x384xf32> to vector<1x384xf32>
    %6 = vector.extract_strided_slice %2 {offsets = [3, 0], sizes = [1, 384], strides = [1, 1]} : vector<4x384xf32> to vector<1x384xf32>
    %7 = arith.subf %1, %0 : vector<1x384xf32>
    %8 = arith.mulf %4, %7 : vector<1x384xf32>
    %9 = arith.mulf %3, %7 : vector<1x384xf32>
    %10 = arith.maximumf %8, %9 : vector<1x384xf32>
    %c381_i32 = arith.constant 381 : i32
    %11 = tpu.dynamic_rotate %0 by %c381_i32 dim 1 : vector<1x384xf32>, i32 -> vector<1x384xf32>
    %12 = arith.subf %11, %0 : vector<1x384xf32>
    %13 = math.absf %12 : vector<1x384xf32>
    %14 = arith.mulf %13, %5 : vector<1x384xf32>
    %15 = arith.addf %10, %14 : vector<1x384xf32>
    %c383_i32 = arith.constant 383 : i32
    %16 = tpu.dynamic_rotate %0 by %c383_i32 dim 1 : vector<1x384xf32>, i32 -> vector<1x384xf32>
    %17 = arith.subf %0, %16 : vector<1x384xf32>
    %cst = arith.constant 0.000000e+00 : f32
    %18 = vector.broadcast %cst : f32 to vector<1x384xf32>
    %19 = arith.maximumf %17, %18 : vector<1x384xf32>
    %20 = arith.mulf %19, %6 : vector<1x384xf32>
    %21 = arith.addf %15, %20 : vector<1x384xf32>
    %22 = vector.shape_cast %21 : vector<1x384xf32> to vector<1x1x384xf32>
    %cst_5 = arith.constant dense<0.000000e+00> : vector<1xf32>
    %23 = vector.multi_reduction <add>, %22, %cst_5 [1, 2] : vector<1x1x384xf32> to vector<1xf32>
    %24 = vector.shape_cast %23 : vector<1xf32> to vector<1x1x1xf32>
    %25 = vector.extract %24[0, 0, 0] : f32 from vector<1x1x1xf32>
    %cst_6 = arith.constant 1.000000e+00 : f32
    %26 = vector.broadcast %cst_6 : f32 to vector<1x8x128xf32>
    %27 = vector.broadcast %25 : f32 to vector<1x8x128xf32>
    %28 = arith.mulf %27, %26 : vector<1x8x128xf32>
    %c0_7 = arith.constant 0 : index
    %c0_8 = arith.constant 0 : index
    %c0_9 = arith.constant 0 : index
    %29 = vector.load %arg4[%c0_7, %c0_8, %c0_9] : memref<1x8x128xf32, #tpu.memory_space<vmem>>, vector<1x8x128xf32>
    tpu.vector_store %arg4[%c0_7, %c0_8, %c0_9], %28 {strides = array<i32>} : memref<1x8x128xf32, #tpu.memory_space<vmem>>, vector<1x8x128xf32>,
    return
  }
  func.func @transform_0(%arg0: i32) -> (i32, i32) {
    %c0_i32 = arith.constant 0 : i32
    %c0_i32_0 = arith.constant 0 : i32
    %c0_i32_1 = arith.constant 0 : i32
    return %c0_i32, %c0_i32_0 : i32, i32
  }
  func.func @transform_1(%arg0: i32) -> (i32, i32) {
    %c0_i32 = arith.constant 0 : i32
    %c0_i32_0 = arith.constant 0 : i32
    return %arg0, %c0_i32 : i32, i32
  }
  func.func @transform_2(%arg0: i32) -> (i32, i32) {
    %c0_i32 = arith.constant 0 : i32
    %c0_i32_0 = arith.constant 0 : i32
    return %arg0, %c0_i32 : i32, i32
  }
  func.func @transform_3(%arg0: i32) -> (i32, i32, i32) {
    %c0_i32 = arith.constant 0 : i32
    %c0_i32_0 = arith.constant 0 : i32
    %c0_i32_1 = arith.constant 0 : i32
    return %arg0, %c0_i32, %c0_i32_0 : i32, i32, i32
  }
}

</mosaic_0001>

<llo_original>
// kernel: tpu_custom_call.1
$region0: #{tpu_custom_call.1}
  #allocation0 [shape = 'u32[]', space=smem, size = 0x4, offset = 0x4, fixed_abs, tag = 'smem constant byte address 0x4 - core index']
  #allocation1 [shape = 'u32[144,128]{1,0:T(1,128)}', space=vmem, size = 0x12000, scoped, tag = 'internal scratch']
  %s0 = inlined_call_operand.hbm [shape: f32[4,384], index: 0, kind: input, shape index: {}]
  %s1 = inlined_call_operand.vmem [shape: f32[1,384], index: 1, kind: input, shape index: {}]
  %s2 = inlined_call_operand.vmem [shape: f32[1,384], index: 2, kind: input, shape index: {}]
  %s3 = inlined_call_operand.hbm [shape: f32[1,8,128], index: 3, kind: output, shape index: {}]
  %s4 = sld [smem:[#allocation0]]
  $region26: #{tpu_custom_call.1} parent=0
    _
  %s6 = ssub.s32 1, %s4
  %s7 = scalar_select 0, %s6, %s4
  $region1: #{tpu_custom_call.1} parent=0
    #allocation2 [shape = 'u8[6144]{0}', space=vmem, size = 0x1800, scoped, tag = 'input window, operand 0, single buffered']
    #allocation3 [shape = 's32[1]{0}', space=sflag, size = 0x4, scoped, tag = 'scoped memory for tpu_custom_call.1']
    #allocation4 [shape = 's32[1]{0}', space=sflag, size = 0x4, scoped, tag = 'scoped memory for tpu_custom_call.1']
    #allocation5 [shape = 'u8[4096]{0}', space=vmem, size = 0x1000, scoped, tag = 'output window, operand 0, single buffered']
    %8 = vsyncpa [#allocation3], 0
    %9 = vsyncpa [#allocation4], 0
    // Predicated region
    $region2: #{tpu_custom_call.1} parent=1 // pred_check
      _
    $region3: #{tpu_custom_call.1} parent=1 // pred_check_branch
      %11 = sbr.rel (0) target = $region5
    $region4: #{tpu_custom_call.1} parent=1 // pred_region
      %s13 = ssub.s32 192, 192
      %14 = vsyncadd [#allocation3], %s13
      %s16 = sshll.u32 [#allocation2], 4
      %s17 = int_to_ptr.vmem [resolvable:$true] %s16
      %19 = dma.hbm_to_vmem [thread:$0]  %s0, 192, %s17, [#allocation3]
    $region5: #{tpu_custom_call.1} parent=1 // pred_fallthru
      _
    // Predicated region
    $region6: #{tpu_custom_call.1} parent=1 // pred_check
      _
    $region7: #{tpu_custom_call.1} parent=1 // pred_check_branch
      %21 = sbr.rel (0) target = $region9
    $region8: #{tpu_custom_call.1} parent=1 // pred_region
      _
    $region9: #{tpu_custom_call.1} parent=1 // pred_fallthru
      _
    // Predicated region
    $region10: #{tpu_custom_call.1} parent=1 // pred_check
      _
    $region11: #{tpu_custom_call.1} parent=1 // pred_check_branch
      %23 = sbr.rel (0) target = $region13
    $region12: #{tpu_custom_call.1} parent=1 // pred_region
      _
    $region13: #{tpu_custom_call.1} parent=1 // pred_fallthru
      _
    // Predicated region
    $region14: #{tpu_custom_call.1} parent=1 // pred_check
      _
    $region15: #{tpu_custom_call.1} parent=1 // pred_check_branch
      %25 = sbr.rel (0) target = $region17
    $region16: #{tpu_custom_call.1} parent=1 // pred_region
      %26 = dma.done [#allocation3], 192
    $region17: #{tpu_custom_call.1} parent=1 // pred_fallthru
      _
    %v27 = vld [vmem:[%s1] sm:$0x7]
    %v28 = vld [vmem:[%s2] sm:$0x7]
    %v29 = vld [vmem:[#allocation2] sm:$0xff]
    %v30 = vld [vmem:[#allocation2 + $0x8] sm:$0xf]
    %v31 = vsub.f32 %v28, %v27
    %v34 = vunpack.c.l.s4 286326784
    %v35 = vunpack.c.0.s8 %v34
    %v36 = vlaneseq
    %v37 = vshrl.u32 %v36, 7
    %v38 = vsub.s32 %v35, %v37
    %v39 = vrot.slane %v31, %v38
    %v41 = vunpack.c.l.s4 858989090
    %v42 = vunpack.c.0.s8 %v41
    %v43 = vlaneseq
    %v44 = vshrl.u32 %v43, 7
    %v45 = vsub.s32 %v42, %v44
    %v46 = vrot.slane %v31, %v45
    %v49 = vmul.f32 %v29, %v39
    %v50 = vmul.f32 %v30, %v46
    %v53 = vrot.slane %v49, 7
    %v54 = vrot.slane %v50, 7
    %v57 = vmax.f32 %v49, %v53
    %v58 = vmax.f32 %v50, %v54
    %v60 = vlaneseq
    %v61 = vshrl.u32 %v60, 7
    %v62 = vsub.s32 0, %v61
    %v63 = vrot.slane %v27, %v62
    %v64 = vlaneseq
    %v65 = vshrl.u32 %v64, 7
    %v66 = vsub.s32 1, %v65
    %v67 = vrot.slane %v27, %v66
    %v68 = vlaneseq
    %v69 = vshrl.u32 %v68, 7
    %v70 = vsub.s32 2, %v69
    %v71 = vrot.slane %v27, %v70
    %75 = vrot.lane.b32.xlu0 %v63, 125
    %v76 = vpop.permute.xlu0 %75
    %77 = vrot.lane.b32.xlu0 %v67, 125
    %v78 = vpop.permute.xlu0 %77
    %79 = vrot.lane.b32.xlu0 %v71, 125
    %v80 = vpop.permute.xlu0 %79
    %v81 = vlaneseq
    %v82 = vand.u32 %v81, 127
    %vm83 = vcmp.lt.s32.totalorder %v82, 125
    %v84 = vsel %vm83, %v78, %v80
    %v85 = vsel %vm83, %v76, %v78
    %v86 = vsel %vm83, %v80, %v76
    %v87 = vsub.f32 %v85, %v63
    %v88 = vsub.f32 %v84, %v67
    %v89 = vsub.f32 %v86, %v71
    %v90 = vand.u32 2147483647, %v87
    %v91 = vand.u32 2147483647, %v88
    %v92 = vand.u32 2147483647, %v89
    %v95 = vlaneseq
    %v96 = vshrl.u32 %v95, 7
    %v97 = vsub.s32 2, %v96
    %v98 = vrot.slane %v29, %v97
    %v99 = vlaneseq
    %v100 = vshrl.u32 %v99, 7
    %v101 = vsub.s32 6, %v100
    %v102 = vrot.slane %v29, %v101
    %v103 = vlaneseq
    %v104 = vshrl.u32 %v103, 7
    %v105 = vsub.s32 2, %v104
    %v106 = vrot.slane %v30, %v105
    %v110 = vmul.f32 %v90, %v98
    %v111 = vmul.f32 %v91, %v102
    %v112 = vmul.f32 %v92, %v106
    %v116 = vcombine.low %v110, %v111
    %v117 = vrot.slane %v116, 7
    %v118 = vrot.slane %v112, 7
    %v121 = vadd.f32 %v57, %v117
    %v122 = vadd.f32 %v58, %v118
    %123 = vrot.lane.b32.xlu0 %v63, 127
    %v124 = vpop.permute.xlu0 %123
    %125 = vrot.lane.b32.xlu0 %v67, 127
    %v126 = vpop.permute.xlu0 %125
    %127 = vrot.lane.b32.xlu0 %v71, 127
    %v128 = vpop.permute.xlu0 %127
    %vm129 = vcmp.lt.s32.totalorder %v82, 127
    %v130 = vsel %vm129, %v126, %v128
    %v131 = vsel %vm129, %v124, %v126
    %v132 = vsel %vm129, %v128, %v124
    %v136 = vcombine.low %v131, %v130
    %v138 = vunpack.c.l.s4 1966171168
    %v139 = vunpack.c.0.s8 %v138
    %v140 = vlaneseq
    %v141 = vshrl.u32 %v140, 7
    %v142 = vsub.s32 %v139, %v141
    %v143 = vrot.slane %v136, %v142
    %v145 = vunpack.c.l.s4 1966171168
    %v146 = vunpack.c.0.s8 %v145
    %v147 = vlaneseq
    %v148 = vshrl.u32 %v147, 7
    %v149 = vsub.s32 %v146, %v148
    %v150 = vrot.slane %v132, %v149
    %v151 = vcombine.low %v143, %v150
    %v153 = vunpack.c.l.s4 1966171168
    %v154 = vunpack.c.0.s8 %v153
    %v155 = vlaneseq
    %v156 = vshrl.u32 %v155, 7
    %v157 = vsub.s32 %v154, %v156
    %v158 = vrot.slane %v151, %v157
    %v160 = vsub.f32 %v27, %v158
    %v161 = vmax.f32 %v160, 0.0
    %v163 = vunpack.c.l.s4 1966171168
    %v164 = vunpack.c.0.s8 %v163
    %v165 = vlaneseq
    %v166 = vshrl.u32 %v165, 7
    %v167 = vsub.s32 %v164, %v166
    %v168 = vrot.slane %v29, %v167
    %v170 = vunpack.c.l.s4 1966171168
    %v171 = vunpack.c.0.s8 %v170
    %v172 = vlaneseq
    %v173 = vshrl.u32 %v172, 7
    %v174 = vsub.s32 %v171, %v173
    %v175 = vrot.slane %v30, %v174
    %v176 = vcombine.high %v168, %v175
    %v178 = vunpack.c.l.s4 1966171168
    %v179 = vunpack.c.0.s8 %v178
    %v180 = vlaneseq
    %v181 = vshrl.u32 %v180, 7
    %v182 = vsub.s32 %v179, %v181
    %v183 = vrot.slane %v176, %v182
    %v184 = vcombine.high %v183, %v183
    %v186 = vmul.f32 %v161, %v184
    %v189 = vunpack.c.l.s4 286326784
    %v190 = vunpack.c.0.s8 %v189
    %v191 = vlaneseq
    %v192 = vshrl.u32 %v191, 7
    %v193 = vsub.s32 %v190, %v192
    %v194 = vrot.slane %v186, %v193
    %v196 = vunpack.c.l.s4 858989090
    %v197 = vunpack.c.0.s8 %v196
    %v198 = vlaneseq
    %v199 = vshrl.u32 %v198, 7
    %v200 = vsub.s32 %v197, %v199
    %v201 = vrot.slane %v186, %v200
    %v204 = vadd.f32 %v121, %v194
    %v205 = vadd.f32 %v122, %v201
    %v208 = vlaneseq
    %v209 = vshrl.u32 %v208, 7
    %v210 = vsub.s32 1, %v209
    %v211 = vrot.slane %v204, %v210
    %v212 = vlaneseq
    %v213 = vshrl.u32 %v212, 7
    %v214 = vsub.s32 5, %v213
    %v215 = vrot.slane %v204, %v214
    %v216 = vlaneseq
    %v217 = vshrl.u32 %v216, 7
    %v218 = vsub.s32 1, %v217
    %v219 = vrot.slane %v205, %v218
    %vm223 = vcmask 1040384
    %v224 = vsel %vm223, %v211, 0.0
    %v225 = vsel %vm223, %v215, 0.0
    %v226 = vadd.f32 %v224, %v225
    %v227 = vsel %vm223, %v219, 0.0
    %v228 = vadd.f32 %v226, %v227
    %229 = vadd.xlane.f32.xlu0 %v228
    %v230 = vpop.xlane.xlu0 %229
    %v231 = vrot.slane %v230, 4
    %v232 = vadd.f32 %v230, %v231
    %v233 = vrot.slane %v232, 2
    %v234 = vadd.f32 %v232, %v233
    %v235 = vrot.slane %v234, 1
    %v236 = vadd.f32 %v234, %v235
    %s237 = vtos %v236
    %v238 = vstv %s237
    %239 = vst [vmem:[#allocation5] sm:$0xff] %v238
    // Predicated region
    $region18: #{tpu_custom_call.1} parent=1 // pred_check
      _
    $region19: #{tpu_custom_call.1} parent=1 // pred_check_branch
      %241 = sbr.rel (0) target = $region21
    $region20: #{tpu_custom_call.1} parent=1 // pred_region
      %s243 = ssub.s32 128, 128
      %244 = vsyncadd [#allocation4], %s243
      %s246 = sshll.u32 [#allocation5], 4
      %s247 = int_to_ptr.vmem [resolvable:$true] %s246
      %249 = dma.vmem_to_hbm [thread:$0]  %s247, 128, %s3, [#allocation4]
    $region21: #{tpu_custom_call.1} parent=1 // pred_fallthru
      _
    // Predicated region
    $region22: #{tpu_custom_call.1} parent=1 // pred_check
      _
    $region23: #{tpu_custom_call.1} parent=1 // pred_check_branch
      %251 = sbr.rel (0) target = $region25
    $region24: #{tpu_custom_call.1} parent=1 // pred_region
      %252 = dma.done [#allocation4], 128
    $region25: #{tpu_custom_call.1} parent=1 // pred_fallthru
      _
    %253 = vsyncpa [#allocation3], 1
    %254 = vsyncpa [#allocation4], 1

</llo_original>
